<compile_context>
chip_gen: v6e
topology: v6e:2x2x1
jax: 0.10.0
libtpu: 0.0.40
codegen_flags: <defaults>
</compile_context>

<pallas_src>
import numpy as np
import jax
import jax.numpy as jnp
from jax.experimental import pallas as pl
from jax.experimental.pallas import tpu as pltpu

_LANES = 128


def _fill_kernel(value_ref, out_ref):
    # value_ref: (1,) 32-bit scalar in SMEM; out_ref: one output tile in VMEM.
    # Pure splat-and-store: scalar cast + broadcast hoists to a single vreg,
    # all remaining bandwidth goes to the writeback DMA.
    out_ref[...] = jnp.full(out_ref.shape, value_ref[0], dtype=out_ref.dtype)


def _round_up(x, m):
    return -(-int(x) // int(m)) * int(m)


def _cdiv(a, b):
    return -(-int(a) // int(b))


def _native_sublanes(dtype) -> int:
    # Native sublane count for packed dtypes: 8 rows (32-bit), 16 (16-bit), 32 (8-bit).
    itemsize = jnp.dtype(dtype).itemsize
    return {1: 32, 2: 16}.get(itemsize, 8)


def _device_kind() -> str:
    try:
        return jax.devices()[0].device_kind.lower()
    except Exception:
        return ""


def _default_tile_bytes() -> int:
    # v7x (3.2 TB/s HBM per TC) drains even a 16 MiB tile in ~5 us, so go big to
    # bury the ~0.35 us per-step cost; 2 x 16 MiB double-buffered + margin still
    # fits under v7x's 64 MiB physical VMEM.  v5e/v6e: 8 MiB keeps overhead <5%.
    kind = _device_kind()
    if "v7" in kind:
        return 16 << 20
    return 8 << 20


def _num_tensorcores() -> int:
    kind = _device_kind()
    for tag in ("v7", "v4", "v5p"):
        if tag in kind:
            return 2
    return 1


def _plan_blocks(shape, dtype, tile_bytes, min_blocks):
    """Choose (block_shape, grid, index_map, padded_block_bytes) so the kernel
    writes `shape` directly in its final layout (no post-kernel passes)."""
    ndim = len(shape)
    itemsize = jnp.dtype(dtype).itemsize
    sublanes = _native_sublanes(dtype)

    # ---------- 1-D ----------
    if ndim == 1:
        n = shape[0]
        chunk = sublanes * _LANES  # whole-vreg multiple, keeps stores unmasked
        b = max(chunk, (tile_bytes // itemsize) // chunk * chunk)
        if min_blocks > 1 and n >= min_blocks * chunk:
            b = min(b, _round_up(_cdiv(n, min_blocks), chunk))
        if n <= b:
            block, grid = (n,), (1,)
            index_map = lambda i: (0,)
        else:
            block, grid = (b,), (_cdiv(n, b),)
            index_map = lambda i: (i,)
        padded = _round_up(block[0], _LANES) * itemsize
        return block, grid, index_map, padded

    # ---------- N-D (ndim >= 2) ----------
    lead = shape[:-2]
    S, D = shape[-2], shape[-1]
    lane_D = _round_up(D, _LANES)
    slab_pad = _round_up(S, sublanes) * lane_D * itemsize          # per leading element
    n_lead = int(np.prod(lead, dtype=np.int64)) if lead else 1
    padded_total = n_lead * slab_pad

    # -- whole array fits in one tile (common small/medium case) --
    if padded_total <= tile_bytes:
        if min_blocks <= 1:
            return tuple(shape), (1,), (lambda i, nd=ndim: (0,) * nd), padded_total
        # Want >= 2 blocks (keep both TensorCores writing): split one axis.
        split = None
        for ax in range(ndim - 2):                  # prefer a leading axis (always legal)
            if shape[ax] >= 2:
                split = (ax, _cdiv(shape[ax], 2))
                break
        if split is None and S >= 2 * sublanes:
            split = (ndim - 2, _round_up(_cdiv(S, 2), sublanes))
        if split is None and D % _LANES == 0 and D >= 2 * _LANES:
            split = (ndim - 1, _round_up(_cdiv(D, 2), _LANES))
        if split is None:                            # nothing splittable; single block
            return tuple(shape), (1,), (lambda i, nd=ndim: (0,) * nd), padded_total
        ax, bsz = split
        block = tuple(bsz if k == ax else shape[k] for k in range(ndim))
        grid = (2,)
        index_map = lambda i, ax=ax, nd=ndim: tuple(i if k == ax else 0 for k in range(nd))
        return block, grid, index_map, padded_total

    # -- large array: tile trailing dims; pack along dim -3 when slab is full --
    if D % _LANES == 0 and lane_D * sublanes * itemsize > tile_bytes:
        # even `sublanes` rows of the full last dim blow the budget: tile D too
        b_D = max(_LANES, (tile_bytes // (sublanes * itemsize)) // _LANES * _LANES)
        b_D = min(b_D, D)
    else:
        b_D = D                                      # full last dim (forced if not 128-aligned)
    lane_bD = _round_up(b_D, _LANES)
    rows_budget = max(1, tile_bytes // (lane_bD * itemsize))
    if rows_budget >= S:
        b_S = S
    else:
        b_S = min(S, max(sublanes, (rows_budget // sublanes) * sublanes))

    if ndim == 2:
        block = (b_S, b_D)
        grid = (_cdiv(S, b_S), _cdiv(D, b_D))
    else:
        if b_S == S and b_D == D:
            per = _round_up(S, sublanes) * lane_bD * itemsize
            b_l = max(1, min(lead[-1], tile_bytes // max(1, per)))
        else:
            b_l = 1
        block = (1,) * (ndim - 3) + (b_l, b_S, b_D)
        grid = tuple(lead[:-1]) + (_cdiv(lead[-1], b_l), _cdiv(S, b_S), _cdiv(D, b_D))
    index_map = lambda *idx: idx
    padded = (int(np.prod(block[:-2], dtype=np.int64))
              * _round_up(block[-2], sublanes) * _round_up(block[-1], _LANES) * itemsize)
    return block, grid, index_map, padded


def constant_of_shape(shape_tensor, value=None, *, tile_bytes=None, min_blocks=None):
    """Pallas implementation of ONNX ConstantOfShape.

    shape_tensor: 1-D integer array (concrete at trace time) giving output shape.
    value: scalar array (any numel-1 array); defaults to float32 0.0.
    tile_bytes / min_blocks: optional overrides for testing/tuning.
    """
    if value is None:
        value = jnp.zeros((), dtype=jnp.float32)
    value = jnp.asarray(value)
    if value.size != 1:
        raise ValueError('parameter "value" must be scalar')
    out_dtype = value.dtype
    itemsize = jnp.dtype(out_dtype).itemsize

    # Shape must be static at trace time -- mirror of `shape.to(int).tolist()`.
    out_shape = tuple(int(s) for s in np.asarray(shape_tensor).astype(np.int64))
    total = int(np.prod(out_shape, dtype=np.int64)) if len(out_shape) > 0 else 1

    if total == 0:
        return jnp.zeros(out_shape, dtype=out_dtype)

    # SMEM carries 32-bit scalars: ship the fill value as f32 / i32, cast in-kernel.
    # TODO(synk): 64-bit fill values outside the 32-bit range lose precision here.
    if jnp.issubdtype(out_dtype, jnp.floating):
        smem_value = value.reshape((1,)).astype(jnp.float32)
    else:
        smem_value = value.reshape((1,)).astype(jnp.int32)

    work_shape = out_shape if len(out_shape) > 0 else (1,)   # rank-0 target: fill 1 elem

    tb = _default_tile_bytes() if tile_bytes is None else int(tile_bytes)
    if min_blocks is None:
        # On 2-TC chips, keep >= 2 blocks for outputs big enough to care (>= 1 MiB)
        # so both TensorCores drive HBM writeback.
        min_blocks = 2 if (_num_tensorcores() >= 2 and total * itemsize >= (1 << 20)) else 1

    block, grid, index_map, padded_block = _plan_blocks(work_shape, out_dtype, tb, min_blocks)

    # Output is the only pipelined buffer: 2x (double-buffer) padded tile + margin.
    vmem_limit = int(max(32 << 20, 2 * padded_block + (4 << 20)))

    filled = pl.pallas_call(
        _fill_kernel,
        out_shape=jax.ShapeDtypeStruct(work_shape, out_dtype),
        grid_spec=pltpu.PrefetchScalarGridSpec(
            num_scalar_prefetch=0,
            grid=grid,
            in_specs=[pl.BlockSpec(memory_space=pltpu.MemorySpace.SMEM)],
            out_specs=pl.BlockSpec(block, index_map),
        ),
        compiler_params=pltpu.CompilerParams(
            dimension_semantics=("parallel",) * len(grid),
            vmem_limit_bytes=vmem_limit,
        ),
    )(smem_value)

    if len(out_shape) == 0:
        return filled.reshape(())
    return filled


if __name__ == "__main__":
    key = jax.random.PRNGKey(0)

    # Requested output shape, as an ONNX-style 1-D int tensor.
    shape_tensor = jnp.array([2, 4, 16, 16], dtype=jnp.int32)

    # 1. Default value (0.0, float32) -> single full-array block, final layout.
    out0 = constant_of_shape(shape_tensor)
    jax.block_until_ready(out0)
    assert out0.shape == (2, 4, 16, 16) and out0.dtype == jnp.float32
    assert bool(jnp.all(out0 == jnp.full((2, 4, 16, 16), 0.0, dtype=jnp.float32)))

    # 2. Deterministic non-trivial f32 scalar value.
    fill_value = jax.random.normal(key, (), dtype=jnp.float32)
    out1 = constant_of_shape(shape_tensor, value=fill_value)
    jax.block_until_ready(out1)
    expected1 = jnp.full((2, 4, 16, 16), fill_value, dtype=jnp.float32)
    assert out1.shape == expected1.shape and out1.dtype == expected1.dtype
    assert bool(jnp.all(out1 == expected1))

    # 3. bf16 fill (dtype-aware sublane rounding).
    fill_bf16 = fill_value.astype(jnp.bfloat16)
    out2 = constant_of_shape(shape_tensor, value=fill_bf16)
    jax.block_until_ready(out2)
    expected2 = jnp.full((2, 4, 16, 16), fill_bf16, dtype=jnp.bfloat16)
    assert out2.dtype == jnp.bfloat16 and bool(jnp.all(out2 == expected2))

    # 4. Misaligned trailing dims (3,5,7): written directly, no post-kernel slice.
    out3 = constant_of_shape(jnp.array([3, 5, 7], dtype=jnp.int32), value=jnp.float32(1.5))
    jax.block_until_ready(out3)
    assert out3.shape == (3, 5, 7) and bool(jnp.all(out3 == 1.5))

    # 5. 1-D output with a masked partial final block (tile override -> grid=(3,)).
    out4 = constant_of_shape(jnp.array([3000], dtype=jnp.int32), value=jnp.float32(-2.0),
                             tile_bytes=4096)
    jax.block_until_ready(out4)
    assert out4.shape == (3000,) and bool(jnp.all(out4 == -2.0))

    # 6. Multi-block N-D path (trailing-dim tiling): blocks (1,64,256), grid=(4,4,1).
    out5 = constant_of_shape(jnp.array([4, 256, 256], dtype=jnp.int32),
                             value=jnp.int32(7), tile_bytes=64 << 10)
    jax.block_until_ready(out5)
    assert out5.shape == (4, 256, 256) and out5.dtype == jnp.int32
    assert bool(jnp.all(out5 == 7))

    # 7. Forced two-block split (the v7x both-TC path) on a small output.
    out6 = constant_of_shape(shape_tensor, value=jnp.float32(3.25), min_blocks=2)
    jax.block_until_ready(out6)
    assert out6.shape == (2, 4, 16, 16) and bool(jnp.all(out6 == 3.25))

    print("KERNEL_OK")
</pallas_src>

<mosaic_0001>
module attributes {stable_mosaic.version = 11 : i64} {
  func.func @_fill_kernel(%arg0: i32, %arg1: memref<1xf32, #tpu.memory_space<smem>>, %arg2: memref<2x4x16x16xf32, #tpu.memory_space<vmem>>) attributes {dimension_semantics = [#tpu.dimension_semantics<parallel>], iteration_bounds = array<i64: 1>, scalar_prefetch = 0 : i64, scratch_operands = 0 : i64, tpu.core_type = #tpu.core_type<tc>, window_params = [{transform_indices = @transform_0, window_bounds = array<i64: 1>}, {pipeline_mode = #tpu.pipeline_mode<synchronous>, transform_indices = @transform_1, window_bounds = array<i64: 2, 4, 16, 16>}]} {
    %c0 = arith.constant 0 : index
    %0 = memref.load %arg1[%c0] : memref<1xf32, #tpu.memory_space<smem>>
    %1 = vector.broadcast %0 : f32 to vector<2x4x16x16xf32>
    %c0_0 = arith.constant 0 : index
    %c0_1 = arith.constant 0 : index
    %c0_2 = arith.constant 0 : index
    %c0_3 = arith.constant 0 : index
    %2 = vector.load %arg2[%c0_0, %c0_1, %c0_2, %c0_3] : memref<2x4x16x16xf32, #tpu.memory_space<vmem>>, vector<2x4x16x16xf32>
    tpu.vector_store %arg2[%c0_0, %c0_1, %c0_2, %c0_3], %1 {strides = array<i32>} : memref<2x4x16x16xf32, #tpu.memory_space<vmem>>, vector<2x4x16x16xf32>,
    return
  }
  func.func @transform_0(%arg0: i32) -> i32 {
    %c0_i32 = arith.constant 0 : i32
    %c0_i32_0 = arith.constant 0 : i32
    return %c0_i32 : i32
  }
  func.func @transform_1(%arg0: i32) -> (i32, i32, i32, i32) {
    %c0_i32 = arith.constant 0 : i32
    %c0_i32_0 = arith.constant 0 : i32
    %c0_i32_1 = arith.constant 0 : i32
    %c0_i32_2 = arith.constant 0 : i32
    %c0_i32_3 = arith.constant 0 : i32
    return %c0_i32, %c0_i32_0, %c0_i32_1, %c0_i32_2 : i32, i32, i32, i32
  }
}

</mosaic_0001>

<llo_original>
// kernel: tpu_custom_call.1
$region0: #{tpu_custom_call.1}
  #allocation0 [shape = 'u32[]', space=smem, size = 0x4, offset = 0x4, fixed_abs, tag = 'smem constant byte address 0x4 - core index']
  #allocation1 [shape = 'u32[144,128]{1,0:T(1,128)}', space=vmem, size = 0x12000, scoped, tag = 'internal scratch']
  #allocation2 [shape = 'f32[1]{0:T(128)S(6)}', space=smem, size = 0x200, scoped, tag = 'scoped memory for tpu_custom_call.1']
  %s0 = inlined_call_operand.<no memory space> [shape: f32[1], index: 0, kind: input, shape index: {}]
  %s1 = inlined_call_operand.hbm [shape: f32[2,4,16,16], index: 1, kind: output, shape index: {}]
  %s2 = sld [smem:[#allocation0]]
  $region14: #{tpu_custom_call.1} parent=0
    _
  %s4 = ssub.s32 1, %s2
  %s5 = scalar_select 0, %s4, %s2
  %6 = sst [smem:[#allocation2]] %s0
  $region1: #{tpu_custom_call.1} parent=0
    #allocation3 [shape = 'u8[65536]{0}', space=vmem, size = 0x10000, scoped, tag = 'output window, operand 0, single buffered']
    #allocation4 [shape = 's32[1]{0}', space=sflag, size = 0x4, scoped, tag = 'scoped memory for tpu_custom_call.1']
    %7 = vsyncpa [#allocation4], 0
    // Predicated region
    $region2: #{tpu_custom_call.1} parent=1 // pred_check
      _
    $region3: #{tpu_custom_call.1} parent=1 // pred_check_branch
      %9 = sbr.rel (0) target = $region5
    $region4: #{tpu_custom_call.1} parent=1 // pred_region
      _
    $region5: #{tpu_custom_call.1} parent=1 // pred_fallthru
      _
    %s10 = sld [smem:[#allocation2]]
    %v11 = vstv %s10
    %vm12 = vcmask 130048
    %13 = vst.msk [vmem:[#allocation3] sm:$0xff] %vm12, %v11
    %14 = vst.msk [vmem:[#allocation3 + $0x8] sm:$0xff] %vm12, %v11
    %15 = vst.msk [vmem:[#allocation3 + $0x10] sm:$0xff] %vm12, %v11
    %16 = vst.msk [vmem:[#allocation3 + $0x18] sm:$0xff] %vm12, %v11
    %17 = vst.msk [vmem:[#allocation3 + $0x20] sm:$0xff] %vm12, %v11
    %18 = vst.msk [vmem:[#allocation3 + $0x28] sm:$0xff] %vm12, %v11
    %19 = vst.msk [vmem:[#allocation3 + $0x30] sm:$0xff] %vm12, %v11
    %20 = vst.msk [vmem:[#allocation3 + $0x38] sm:$0xff] %vm12, %v11
    %21 = vst.msk [vmem:[#allocation3 + $0x40] sm:$0xff] %vm12, %v11
    %22 = vst.msk [vmem:[#allocation3 + $0x48] sm:$0xff] %vm12, %v11
    %23 = vst.msk [vmem:[#allocation3 + $0x50] sm:$0xff] %vm12, %v11
    %24 = vst.msk [vmem:[#allocation3 + $0x58] sm:$0xff] %vm12, %v11
    %25 = vst.msk [vmem:[#allocation3 + $0x60] sm:$0xff] %vm12, %v11
    %26 = vst.msk [vmem:[#allocation3 + $0x68] sm:$0xff] %vm12, %v11
    %27 = vst.msk [vmem:[#allocation3 + $0x70] sm:$0xff] %vm12, %v11
    %28 = vst.msk [vmem:[#allocation3 + $0x78] sm:$0xff] %vm12, %v11
    // Predicated region
    $region6: #{tpu_custom_call.1} parent=1 // pred_check
      _
    $region7: #{tpu_custom_call.1} parent=1 // pred_check_branch
      %30 = sbr.rel (0) target = $region9
    $region8: #{tpu_custom_call.1} parent=1 // pred_region
      %s32 = ssub.s32 2048, 2048
      %33 = vsyncadd [#allocation4], %s32
      %s34 = sshll.u32 [#allocation3], 4
      %s35 = int_to_ptr.vmem [resolvable:$true] %s34
      %40 = dma.vmem_to_hbm [thread:$0]  %s35, 2048, %s1, [#allocation4], 128, 128, 8
    $region9: #{tpu_custom_call.1} parent=1 // pred_fallthru
      _
    // Predicated region
    $region10: #{tpu_custom_call.1} parent=1 // pred_check
      _
    $region11: #{tpu_custom_call.1} parent=1 // pred_check_branch
      %42 = sbr.rel (0) target = $region13
    $region12: #{tpu_custom_call.1} parent=1 // pred_region
      %43 = dma.done [#allocation4], 2048
    $region13: #{tpu_custom_call.1} parent=1 // pred_fallthru
      _
    %44 = vsyncpa [#allocation4], 1

</llo_original>
